<compile_context>
chip_gen: v7x
topology: tpu7x:2x2x1
jax: 0.10.0
libtpu: 0.0.40
codegen_flags: <defaults>
</compile_context>

<pallas_src>
import functools

import jax
import jax.numpy as jnp
from jax.experimental import pallas as pl
from jax.experimental.pallas import tpu as pltpu


def _round_up(a, b):
    return (a + b - 1) // b * b


# ----------------------------- Pallas kernel ------------------------------ #
def _convgru_kernel(rhs_ref, w_ref, b_ref, h_ref, o_ref, *, hidden_dim, kh, kw,
                    row_stride):
    """Fused (both convs, all gates) ConvGRU step for one batch element.

    rhs_ref: (Kc, L_in)         bf16  raw [x | 'same'-padded h] channels, spatial flattened
    w_ref:   (kh*kw, 4*hd, Kc)  bf16  per-tap fused block weight (resident)
    b_ref:   (4*hd, 1)          f32   fused biases (r/z biases pre-summed)
    h_ref:   (hd, L_out)        f32   current hidden state on the output columns
    o_ref:   (hd, L_out)        f32   next hidden state (lane-dense)
    """
    hd = hidden_dim
    l_out = o_ref.shape[-1]

    # In-kernel im2col: output column p reads input column p + i*row_stride + j
    # for conv tap (i, j).  Accumulate the kh*kw shifted matmuls in f32.
    acc = None
    for i in range(kh):
        for j in range(kw):
            off = i * row_stride + j
            tap = jnp.dot(w_ref[i * kw + j],
                          rhs_ref[:, off:off + l_out],
                          preferred_element_type=jnp.float32)
            acc = tap if acc is None else acc + tap
    g = acc + b_ref[...]                                # f32 bias (not folded into bf16 weight)

    rz = jax.nn.sigmoid(g[0:2 * hd])                    # one EUP pass for r|z
    r, z = rz[0:hd], rz[hd:2 * hd]
    n = jnp.tanh(g[2 * hd:3 * hd] + r * g[3 * hd:4 * hd])
    # h*z + n*(1-z) == n + z*(h - n)  (one fewer multiply)
    o_ref[...] = (n + z * (h_ref[...] - n)).astype(o_ref.dtype)


# --------------------------- parameter preparation ------------------------- #
def prepare_convgru_params(wx, bx, wh, bh, kernel_size, compute_dtype=jnp.bfloat16):
    """Build the fused per-tap block weight + f32 bias ONCE (hoist out of the
    per-timestep path of a recurrent loop).

    Returns:
      w_shift: (kh*kw, 4*hd, Kc_pad) compute_dtype.  Rows = [r | z | cc_h_i | cc_h_h],
               cols = [x channels | h channels | zero pad].
      b_fused: (4*hd, 1) float32, r/z biases pre-summed.
    """
    kh, kw = kernel_size
    ci = wx.shape[1]
    hd = wx.shape[0] // 3
    kc = ci + hd
    kc_pad = _round_up(kc, 16)                          # bf16 sublane-tile friendly

    wx_s = jnp.transpose(wx, (2, 3, 0, 1)).reshape(kh * kw, 3 * hd, ci)
    wh_s = jnp.transpose(wh, (2, 3, 0, 1)).reshape(kh * kw, 3 * hd, hd)
    w = jnp.zeros((kh * kw, 4 * hd, kc_pad), jnp.float32)
    w = w.at[:, 0:2 * hd, 0:ci].set(wx_s[:, 0:2 * hd])            # r, z  (x part)
    w = w.at[:, 0:2 * hd, ci:kc].set(wh_s[:, 0:2 * hd])           # r, z  (h part)
    w = w.at[:, 2 * hd:3 * hd, 0:ci].set(wx_s[:, 2 * hd:3 * hd])  # cc_h_i
    w = w.at[:, 3 * hd:4 * hd, ci:kc].set(wh_s[:, 2 * hd:3 * hd]) # cc_h_h
    b = jnp.concatenate([bx[0:2 * hd] + bh[0:2 * hd],
                         bx[2 * hd:3 * hd],
                         bh[2 * hd:3 * hd]])
    return w.astype(compute_dtype), b.astype(jnp.float32)[:, None]


# ------------------------------- forward step ------------------------------ #
def conv_gru_cell(x_nchw, h_nchw, w_shift, b_fused, *, kernel_size, stride=(1, 1),
                  compute_dtype=jnp.bfloat16):
    """ConvGRUCell.forward.  x: (N, C_in, H, W), h: (N, hd, Ho, Wo) -> h_next (N, hd, Ho, Wo)."""
    kh, kw = kernel_size
    assert kh % 2 == 1 and kw % 2 == 1, "'same' hidden conv assumes odd kernel"
    # TODO(synk): general conv_input stride needs the old im2col path or a
    #             space-to-batch decomposition; the fused flat-shift kernel
    #             assumes stride (1, 1) (conv_h is always stride 1 / 'same').
    assert tuple(stride) == (1, 1), "fused kernel currently supports stride (1, 1) only"

    n_b, ci, H, W = x_nchw.shape
    hd = h_nchw.shape[1]
    ho, wo = H - kh + 1, W - kw + 1
    assert (ho, wo) == (h_nchw.shape[2], h_nchw.shape[3]), \
        "hidden state spatial size must match conv_input output"

    kc = ci + hd
    kc_pad = _round_up(kc, 16)
    assert w_shift.shape == (kh * kw, 4 * hd, kc_pad)
    ph, pw = kh // 2, kw // 2

    # flattened-spatial layout: output column p = r*W + c  (gutter cols c>=wo are sliced off)
    l_out = _round_up(ho * W, 128)                      # lane-dense output width
    max_off = (kh - 1) * W + (kw - 1)                   # largest in-kernel shift
    l_in = _round_up(l_out + max_off, 128)              # streamed input width

    # cast streamed operands to bf16 BEFORE the prep passes (halves prep bytes)
    x_bf = x_nchw.astype(compute_dtype)
    h_pad = jnp.pad(h_nchw.astype(compute_dtype),
                    ((0, 0), (0, 0), (ph, ph), (pw, pw)))          # 'same' pad -> (n, hd, H, W)
    rhs = jnp.concatenate([x_bf, h_pad], axis=1).reshape(n_b, kc, H * W)
    rhs = jnp.pad(rhs, ((0, 0), (0, kc_pad - kc), (0, l_in - H * W)))

    # f32 h_cur laid out on the same output columns (its buffer is donated to h_next)
    h_cols = jnp.pad(x_nchw.dtype.type(0) + h_nchw,    # keep f32
                     ((0, 0), (0, 0), (0, 0), (0, W - wo))).reshape(n_b, hd, ho * W)
    h_cols = jnp.pad(h_cols, ((0, 0), (0, 0), (0, l_out - ho * W)))

    kernel = functools.partial(_convgru_kernel, hidden_dim=hd, kh=kh, kw=kw,
                               row_stride=W)

    # per-step VMEM footprint (double-buffered streamed blocks) -> scoped limit
    blk_bytes = (2 * kc_pad * l_in * 2                  # rhs (bf16) x2 buffers
                 + kh * kw * 4 * hd * kc_pad * 2        # resident fused weight
                 + 4 * hd * 4                           # bias
                 + 2 * 2 * hd * l_out * 4)              # h_cur + out (f32) x2 buffers
    vmem_limit = int(min(96 * 2**20, max(4 * 2**20, 4 * blk_bytes)))

    cost = pl.CostEstimate(
        flops=2 * n_b * kh * kw * (4 * hd) * kc_pad * l_out + 8 * n_b * hd * l_out,
        transcendentals=3 * n_b * hd * l_out,
        bytes_accessed=rhs.size * 2 + w_shift.size * 2 + b_fused.size * 4
                       + 2 * h_cols.size * 4)

    out = pl.pallas_call(
        kernel,
        out_shape=jax.ShapeDtypeStruct((n_b, hd, l_out), h_nchw.dtype),
        grid_spec=pltpu.PrefetchScalarGridSpec(
            num_scalar_prefetch=0,
            grid=(n_b,),
            in_specs=[
                pl.BlockSpec((None, kc_pad, l_in), lambda b: (b, 0, 0)),        # raw [x|h_pad] (streamed)
                pl.BlockSpec((kh * kw, 4 * hd, kc_pad), lambda b: (0, 0, 0)),   # fused weight (resident)
                pl.BlockSpec((4 * hd, 1), lambda b: (0, 0)),                    # f32 bias (resident)
                pl.BlockSpec((None, hd, l_out), lambda b: (b, 0, 0)),           # f32 h_cur
            ],
            out_specs=pl.BlockSpec((None, hd, l_out), lambda b: (b, 0, 0)),
        ),
        input_output_aliases={3: 0},          # h_next reuses h_cur's HBM buffer
        compiler_params=pltpu.CompilerParams(
            dimension_semantics=("parallel",),   # >=2 steps -> both v7x TensorCores busy
            vmem_limit_bytes=vmem_limit),
        cost_estimate=cost,
    )(rhs, w_shift, b_fused, h_cols)

    # valid output columns are p = r*W + c with c < wo
    return out[:, :, :ho * W].reshape(n_b, hd, ho, W)[:, :, :, :wo]


# ---------------------------- pure-JAX reference --------------------------- #
def _ref_conv_gru(x, h, wx, bx, wh, bh, stride, kernel_size):
    kh, kw = kernel_size
    ci = jax.lax.conv_general_dilated(
        x, wx, window_strides=stride, padding='VALID',
        dimension_numbers=('NCHW', 'OIHW', 'NCHW'),
        precision=jax.lax.Precision.HIGHEST) + bx[None, :, None, None]
    ch = jax.lax.conv_general_dilated(
        h, wh, window_strides=(1, 1),
        padding=[(kh // 2, kh // 2), (kw // 2, kw // 2)],
        dimension_numbers=('NCHW', 'OIHW', 'NCHW'),
        precision=jax.lax.Precision.HIGHEST) + bh[None, :, None, None]
    hd = h.shape[1]
    r = jax.nn.sigmoid(ci[:, 0:hd] + ch[:, 0:hd])
    z = jax.nn.sigmoid(ci[:, hd:2 * hd] + ch[:, hd:2 * hd])
    n = jnp.tanh(ci[:, 2 * hd:3 * hd] + r * ch[:, 2 * hd:3 * hd])
    return h * z + n * (1.0 - z)


# ---------------------------------- main ----------------------------------- #
if __name__ == "__main__":
    key = jax.random.PRNGKey(0)
    k_x, k_h, k_wx, k_bx, k_wh, k_bh = jax.random.split(key, 6)

    # module config
    input_dim = 4
    hidden_dim = 8
    kernel_size = (3, 3)
    stride = (1, 1)

    # input / hidden shapes (PyTorch NCHW convention)
    N, H, W = 2, 16, 16
    Ho = (H - kernel_size[0]) // stride[0] + 1
    Wo = (W - kernel_size[1]) // stride[1] + 1

    x = jax.random.normal(k_x, (N, input_dim, H, W), jnp.float32)
    h = jax.random.normal(k_h, (N, hidden_dim, Ho, Wo), jnp.float32)

    # Conv2d parameters (out, in, kh, kw)
    wx = 0.1 * jax.random.normal(k_wx, (3 * hidden_dim, input_dim) + kernel_size, jnp.float32)
    bx = 0.1 * jax.random.normal(k_bx, (3 * hidden_dim,), jnp.float32)
    wh = 0.1 * jax.random.normal(k_wh, (3 * hidden_dim, hidden_dim) + kernel_size, jnp.float32)
    bh = 0.1 * jax.random.normal(k_bh, (3 * hidden_dim,), jnp.float32)

    # hoisted once (outside the per-timestep / scanned path)
    w_shift, b_fused = prepare_convgru_params(wx, bx, wh, bh, kernel_size)

    fwd = jax.jit(functools.partial(conv_gru_cell,
                                    kernel_size=kernel_size, stride=stride))
    h_next = jax.block_until_ready(fwd(x, h, w_shift, b_fused))

    # correctness check against an f32 (HIGHEST-precision) reference of the
    # PyTorch forward.  Streamed conv operands are bf16 (f32 accumulate); bias,
    # h_cur and all gate math are f32, so tolerance reflects bf16 input rounding.
    h_ref = _ref_conv_gru(x, h, wx, bx, wh, bh, stride, kernel_size)
    assert h_next.shape == (N, hidden_dim, Ho, Wo)
    max_err = float(jnp.max(jnp.abs(h_next - h_ref)))
    assert max_err < 3e-2, max_err

    print("KERNEL_OK")
</pallas_src>

<mosaic_0001>
module attributes {stable_mosaic.version = 11 : i64} {
  func.func @_convgru_kernel(%arg0: i32, %arg1: memref<1x16x384xbf16, #tpu.memory_space<vmem>>, %arg2: memref<9x32x16xbf16, #tpu.memory_space<vmem>>, %arg3: memref<32x1xf32, #tpu.memory_space<vmem>>, %arg4: memref<1x8x256xf32, #tpu.memory_space<vmem>>, %arg5: memref<1x8x256xf32, #tpu.memory_space<vmem>>) attributes {dimension_semantics = [#tpu.dimension_semantics<parallel>], iteration_bounds = array<i64: 2>, scalar_prefetch = 0 : i64, scratch_operands = 0 : i64, tpu.core_type = #tpu.core_type<tc>, window_params = [{transform_indices = @transform_0, window_bounds = array<i64: 1, 16, 384>}, {pipeline_mode = #tpu.pipeline_mode<synchronous>, transform_indices = @transform_1, window_bounds = array<i64: 9, 32, 16>}, {pipeline_mode = #tpu.pipeline_mode<synchronous>, transform_indices = @transform_2, window_bounds = array<i64: 32, 1>}, {transform_indices = @transform_3, window_bounds = array<i64: 1, 8, 256>}, {transform_indices = @transform_4, window_bounds = array<i64: 1, 8, 256>}]} {
    %c0 = arith.constant 0 : index
    %c0_0 = arith.constant 0 : index
    %c0_1 = arith.constant 0 : index
    %0 = vector.load %arg2[%c0, %c0_0, %c0_1] : memref<9x32x16xbf16, #tpu.memory_space<vmem>>, vector<1x32x16xbf16>
    %1 = vector.shape_cast %0 : vector<1x32x16xbf16> to vector<32x16xbf16>
    %c0_2 = arith.constant 0 : index
    %c0_3 = arith.constant 0 : index
    %c0_4 = arith.constant 0 : index
    %2 = vector.load %arg1[%c0_2, %c0_3, %c0_4] : memref<1x16x384xbf16, #tpu.memory_space<vmem>>, vector<1x16x256xbf16>
    %3 = vector.shape_cast %2 : vector<1x16x256xbf16> to vector<16x256xbf16>
    %cst = arith.constant dense<0.000000e+00> : vector<32x256xf32>
    %4 = tpu.matmul %1, %3, %cst {dimension_numbers = #tpu.dot_dimension_numbers<[1], [0], [0], [1], [0, 0, 1, 1], [], []>} : vector<32x16xbf16>, vector<16x256xbf16>, vector<32x256xf32> -> vector<32x256xf32>
    %c1 = arith.constant 1 : index
    %c0_5 = arith.constant 0 : index
    %c0_6 = arith.constant 0 : index
    %5 = vector.load %arg2[%c1, %c0_5, %c0_6] : memref<9x32x16xbf16, #tpu.memory_space<vmem>>, vector<1x32x16xbf16>
    %6 = vector.shape_cast %5 : vector<1x32x16xbf16> to vector<32x16xbf16>
    %c0_7 = arith.constant 0 : index
    %c0_8 = arith.constant 0 : index
    %c1_9 = arith.constant 1 : index
    %7 = vector.load %arg1[%c0_7, %c0_8, %c1_9] : memref<1x16x384xbf16, #tpu.memory_space<vmem>>, vector<1x16x256xbf16>
    %8 = vector.shape_cast %7 : vector<1x16x256xbf16> to vector<16x256xbf16>
    %cst_10 = arith.constant dense<0.000000e+00> : vector<32x256xf32>
    %9 = tpu.matmul %6, %8, %cst_10 {dimension_numbers = #tpu.dot_dimension_numbers<[1], [0], [0], [1], [0, 0, 1, 1], [], []>} : vector<32x16xbf16>, vector<16x256xbf16>, vector<32x256xf32> -> vector<32x256xf32>
    %10 = arith.addf %4, %9 : vector<32x256xf32>
    %c2 = arith.constant 2 : index
    %c0_11 = arith.constant 0 : index
    %c0_12 = arith.constant 0 : index
    %11 = vector.load %arg2[%c2, %c0_11, %c0_12] : memref<9x32x16xbf16, #tpu.memory_space<vmem>>, vector<1x32x16xbf16>
    %12 = vector.shape_cast %11 : vector<1x32x16xbf16> to vector<32x16xbf16>
    %c0_13 = arith.constant 0 : index
    %c0_14 = arith.constant 0 : index
    %c2_15 = arith.constant 2 : index
    %13 = vector.load %arg1[%c0_13, %c0_14, %c2_15] : memref<1x16x384xbf16, #tpu.memory_space<vmem>>, vector<1x16x256xbf16>
    %14 = vector.shape_cast %13 : vector<1x16x256xbf16> to vector<16x256xbf16>
    %cst_16 = arith.constant dense<0.000000e+00> : vector<32x256xf32>
    %15 = tpu.matmul %12, %14, %cst_16 {dimension_numbers = #tpu.dot_dimension_numbers<[1], [0], [0], [1], [0, 0, 1, 1], [], []>} : vector<32x16xbf16>, vector<16x256xbf16>, vector<32x256xf32> -> vector<32x256xf32>
    %16 = arith.addf %10, %15 : vector<32x256xf32>
    %c3 = arith.constant 3 : index
    %c0_17 = arith.constant 0 : index
    %c0_18 = arith.constant 0 : index
    %17 = vector.load %arg2[%c3, %c0_17, %c0_18] : memref<9x32x16xbf16, #tpu.memory_space<vmem>>, vector<1x32x16xbf16>
    %18 = vector.shape_cast %17 : vector<1x32x16xbf16> to vector<32x16xbf16>
    %c0_19 = arith.constant 0 : index
    %c0_20 = arith.constant 0 : index
    %c16 = arith.constant 16 : index
    %19 = vector.load %arg1[%c0_19, %c0_20, %c16] : memref<1x16x384xbf16, #tpu.memory_space<vmem>>, vector<1x16x256xbf16>
    %20 = vector.shape_cast %19 : vector<1x16x256xbf16> to vector<16x256xbf16>
    %cst_21 = arith.constant dense<0.000000e+00> : vector<32x256xf32>
    %21 = tpu.matmul %18, %20, %cst_21 {dimension_numbers = #tpu.dot_dimension_numbers<[1], [0], [0], [1], [0, 0, 1, 1], [], []>} : vector<32x16xbf16>, vector<16x256xbf16>, vector<32x256xf32> -> vector<32x256xf32>
    %22 = arith.addf %16, %21 : vector<32x256xf32>
    %c4 = arith.constant 4 : index
    %c0_22 = arith.constant 0 : index
    %c0_23 = arith.constant 0 : index
    %23 = vector.load %arg2[%c4, %c0_22, %c0_23] : memref<9x32x16xbf16, #tpu.memory_space<vmem>>, vector<1x32x16xbf16>
    %24 = vector.shape_cast %23 : vector<1x32x16xbf16> to vector<32x16xbf16>
    %c0_24 = arith.constant 0 : index
    %c0_25 = arith.constant 0 : index
    %c17 = arith.constant 17 : index
    %25 = vector.load %arg1[%c0_24, %c0_25, %c17] : memref<1x16x384xbf16, #tpu.memory_space<vmem>>, vector<1x16x256xbf16>
    %26 = vector.shape_cast %25 : vector<1x16x256xbf16> to vector<16x256xbf16>
    %cst_26 = arith.constant dense<0.000000e+00> : vector<32x256xf32>
    %27 = tpu.matmul %24, %26, %cst_26 {dimension_numbers = #tpu.dot_dimension_numbers<[1], [0], [0], [1], [0, 0, 1, 1], [], []>} : vector<32x16xbf16>, vector<16x256xbf16>, vector<32x256xf32> -> vector<32x256xf32>
    %28 = arith.addf %22, %27 : vector<32x256xf32>
    %c5 = arith.constant 5 : index
    %c0_27 = arith.constant 0 : index
    %c0_28 = arith.constant 0 : index
    %29 = vector.load %arg2[%c5, %c0_27, %c0_28] : memref<9x32x16xbf16, #tpu.memory_space<vmem>>, vector<1x32x16xbf16>
    %30 = vector.shape_cast %29 : vector<1x32x16xbf16> to vector<32x16xbf16>
    %c0_29 = arith.constant 0 : index
    %c0_30 = arith.constant 0 : index
    %c18 = arith.constant 18 : index
    %31 = vector.load %arg1[%c0_29, %c0_30, %c18] : memref<1x16x384xbf16, #tpu.memory_space<vmem>>, vector<1x16x256xbf16>
    %32 = vector.shape_cast %31 : vector<1x16x256xbf16> to vector<16x256xbf16>
    %cst_31 = arith.constant dense<0.000000e+00> : vector<32x256xf32>
    %33 = tpu.matmul %30, %32, %cst_31 {dimension_numbers = #tpu.dot_dimension_numbers<[1], [0], [0], [1], [0, 0, 1, 1], [], []>} : vector<32x16xbf16>, vector<16x256xbf16>, vector<32x256xf32> -> vector<32x256xf32>
    %34 = arith.addf %28, %33 : vector<32x256xf32>
    %c6 = arith.constant 6 : index
    %c0_32 = arith.constant 0 : index
    %c0_33 = arith.constant 0 : index
    %35 = vector.load %arg2[%c6, %c0_32, %c0_33] : memref<9x32x16xbf16, #tpu.memory_space<vmem>>, vector<1x32x16xbf16>
    %36 = vector.shape_cast %35 : vector<1x32x16xbf16> to vector<32x16xbf16>
    %c0_34 = arith.constant 0 : index
    %c0_35 = arith.constant 0 : index
    %c32 = arith.constant 32 : index
    %37 = vector.load %arg1[%c0_34, %c0_35, %c32] : memref<1x16x384xbf16, #tpu.memory_space<vmem>>, vector<1x16x256xbf16>
    %38 = vector.shape_cast %37 : vector<1x16x256xbf16> to vector<16x256xbf16>
    %cst_36 = arith.constant dense<0.000000e+00> : vector<32x256xf32>
    %39 = tpu.matmul %36, %38, %cst_36 {dimension_numbers = #tpu.dot_dimension_numbers<[1], [0], [0], [1], [0, 0, 1, 1], [], []>} : vector<32x16xbf16>, vector<16x256xbf16>, vector<32x256xf32> -> vector<32x256xf32>
    %40 = arith.addf %34, %39 : vector<32x256xf32>
    %c7 = arith.constant 7 : index
    %c0_37 = arith.constant 0 : index
    %c0_38 = arith.constant 0 : index
    %41 = vector.load %arg2[%c7, %c0_37, %c0_38] : memref<9x32x16xbf16, #tpu.memory_space<vmem>>, vector<1x32x16xbf16>
    %42 = vector.shape_cast %41 : vector<1x32x16xbf16> to vector<32x16xbf16>
    %c0_39 = arith.constant 0 : index
    %c0_40 = arith.constant 0 : index
    %c33 = arith.constant 33 : index
    %43 = vector.load %arg1[%c0_39, %c0_40, %c33] : memref<1x16x384xbf16, #tpu.memory_space<vmem>>, vector<1x16x256xbf16>
    %44 = vector.shape_cast %43 : vector<1x16x256xbf16> to vector<16x256xbf16>
    %cst_41 = arith.constant dense<0.000000e+00> : vector<32x256xf32>
    %45 = tpu.matmul %42, %44, %cst_41 {dimension_numbers = #tpu.dot_dimension_numbers<[1], [0], [0], [1], [0, 0, 1, 1], [], []>} : vector<32x16xbf16>, vector<16x256xbf16>, vector<32x256xf32> -> vector<32x256xf32>
    %46 = arith.addf %40, %45 : vector<32x256xf32>
    %c8 = arith.constant 8 : index
    %c0_42 = arith.constant 0 : index
    %c0_43 = arith.constant 0 : index
    %47 = vector.load %arg2[%c8, %c0_42, %c0_43] : memref<9x32x16xbf16, #tpu.memory_space<vmem>>, vector<1x32x16xbf16>
    %48 = vector.shape_cast %47 : vector<1x32x16xbf16> to vector<32x16xbf16>
    %c0_44 = arith.constant 0 : index
    %c0_45 = arith.constant 0 : index
    %c34 = arith.constant 34 : index
    %49 = vector.load %arg1[%c0_44, %c0_45, %c34] : memref<1x16x384xbf16, #tpu.memory_space<vmem>>, vector<1x16x256xbf16>
    %50 = vector.shape_cast %49 : vector<1x16x256xbf16> to vector<16x256xbf16>
    %cst_46 = arith.constant dense<0.000000e+00> : vector<32x256xf32>
    %51 = tpu.matmul %48, %50, %cst_46 {dimension_numbers = #tpu.dot_dimension_numbers<[1], [0], [0], [1], [0, 0, 1, 1], [], []>} : vector<32x16xbf16>, vector<16x256xbf16>, vector<32x256xf32> -> vector<32x256xf32>
    %52 = arith.addf %46, %51 : vector<32x256xf32>
    %c0_47 = arith.constant 0 : index
    %c0_48 = arith.constant 0 : index
    %53 = vector.load %arg3[%c0_47, %c0_48] : memref<32x1xf32, #tpu.memory_space<vmem>>, vector<32x1xf32>
    %54 = vector.broadcast %53 : vector<32x1xf32> to vector<32x256xf32>
    %55 = arith.addf %52, %54 : vector<32x256xf32>
    %56 = vector.extract_strided_slice %55 {offsets = [0, 0], sizes = [16, 256], strides = [1, 1]} : vector<32x256xf32> to vector<16x256xf32>
    %57 = arith.negf %56 : vector<16x256xf32>
    %58 = math.exp %57 : vector<16x256xf32>
    %cst_49 = arith.constant 1.000000e+00 : f32
    %59 = vector.broadcast %cst_49 : f32 to vector<16x256xf32>
    %60 = arith.addf %59, %58 : vector<16x256xf32>
    %61 = arith.divf %59, %60 : vector<16x256xf32>
    %62 = vector.extract_strided_slice %61 {offsets = [0, 0], sizes = [8, 256], strides = [1, 1]} : vector<16x256xf32> to vector<8x256xf32>
    %63 = vector.extract_strided_slice %61 {offsets = [8, 0], sizes = [8, 256], strides = [1, 1]} : vector<16x256xf32> to vector<8x256xf32>
    %64 = vector.extract_strided_slice %55 {offsets = [16, 0], sizes = [8, 256], strides = [1, 1]} : vector<32x256xf32> to vector<8x256xf32>
    %65 = vector.extract_strided_slice %55 {offsets = [24, 0], sizes = [8, 256], strides = [1, 1]} : vector<32x256xf32> to vector<8x256xf32>
    %66 = arith.mulf %62, %65 : vector<8x256xf32>
    %67 = arith.addf %64, %66 : vector<8x256xf32>
    %68 = math.tanh %67 : vector<8x256xf32>
    %c0_50 = arith.constant 0 : index
    %c0_51 = arith.constant 0 : index
    %c0_52 = arith.constant 0 : index
    %69 = vector.load %arg4[%c0_50, %c0_51, %c0_52] : memref<1x8x256xf32, #tpu.memory_space<vmem>>, vector<1x8x256xf32>
    %70 = vector.shape_cast %69 : vector<1x8x256xf32> to vector<8x256xf32>
    %71 = arith.subf %70, %68 : vector<8x256xf32>
    %72 = arith.mulf %63, %71 : vector<8x256xf32>
    %73 = arith.addf %68, %72 : vector<8x256xf32>
    %c0_53 = arith.constant 0 : index
    %c0_54 = arith.constant 0 : index
    %c0_55 = arith.constant 0 : index
    %74 = vector.load %arg5[%c0_53, %c0_54, %c0_55] : memref<1x8x256xf32, #tpu.memory_space<vmem>>, vector<1x8x256xf32>
    %75 = vector.shape_cast %74 : vector<1x8x256xf32> to vector<8x256xf32>
    %76 = vector.shape_cast %73 : vector<8x256xf32> to vector<1x8x256xf32>
    tpu.vector_store %arg5[%c0_53, %c0_54, %c0_55], %76 {strides = array<i32>} : memref<1x8x256xf32, #tpu.memory_space<vmem>>, vector<1x8x256xf32>,
    return
  }
  func.func @transform_0(%arg0: i32) -> (i32, i32, i32) {
    %c0_i32 = arith.constant 0 : i32
    %c0_i32_0 = arith.constant 0 : i32
    %c0_i32_1 = arith.constant 0 : i32
    return %arg0, %c0_i32, %c0_i32_0 : i32, i32, i32
  }
  func.func @transform_1(%arg0: i32) -> (i32, i32, i32) {
    %c0_i32 = arith.constant 0 : i32
    %c0_i32_0 = arith.constant 0 : i32
    %c0_i32_1 = arith.constant 0 : i32
    %c0_i32_2 = arith.constant 0 : i32
    return %c0_i32, %c0_i32_0, %c0_i32_1 : i32, i32, i32
  }
  func.func @transform_2(%arg0: i32) -> (i32, i32) {
    %c0_i32 = arith.constant 0 : i32
    %c0_i32_0 = arith.constant 0 : i32
    %c0_i32_1 = arith.constant 0 : i32
    return %c0_i32, %c0_i32_0 : i32, i32
  }
  func.func @transform_3(%arg0: i32) -> (i32, i32, i32) {
    %c0_i32 = arith.constant 0 : i32
    %c0_i32_0 = arith.constant 0 : i32
    %c0_i32_1 = arith.constant 0 : i32
    return %arg0, %c0_i32, %c0_i32_0 : i32, i32, i32
  }
  func.func @transform_4(%arg0: i32) -> (i32, i32, i32) {
    %c0_i32 = arith.constant 0 : i32
    %c0_i32_0 = arith.constant 0 : i32
    %c0_i32_1 = arith.constant 0 : i32
    return %arg0, %c0_i32, %c0_i32_0 : i32, i32, i32
  }
}

</mosaic_0001>

<llo_original>
// kernel: conv_gru_cell.1
$region0: #{conv_gru_cell.1}
  #allocation0 [shape = 'u32[]', space=smem, size = 0x4, offset = 0x4, fixed_abs, tag = 'smem constant byte address 0x4 - core index']
  #allocation1 [shape = 'u32[144,128]{1,0:T(1,128)}', space=vmem, size = 0x12000, scoped, tag = 'internal scratch']
  %s0 = inlined_call_operand.vmem [shape: bf16[2,16,384], index: 0, kind: input, shape index: {}]
  %s1 = inlined_call_operand.vmem [shape: bf16[9,32,16], index: 1, kind: input, shape index: {}]
  %s2 = inlined_call_operand.vmem [shape: f32[32,1], index: 2, kind: input, shape index: {}]
  %s3 = inlined_call_operand.vmem [shape: f32[2,8,256], index: 3, kind: input, shape index: {}, may-alias: {3,4}]
  %s4 = inlined_call_operand.vmem [shape: f32[2,8,256], index: 4, kind: output, shape index: {}, may-alias: {3,4}]
  %s5 = sld [smem:[#allocation0]]
  $region49: #{conv_gru_cell.1} parent=0
    _
  %s7 = ssub.s32 1, %s5
  %s8 = scalar_select 0, %s7, %s5
  loop: start=0, step=1, limit=4
  $region2: #{conv_gru_cell.1} parent=0 // loop_pre_header
    _
  $region3: #{conv_gru_cell.1} parent=0 // loop_header
    %s10 = sphi 0, %s14
    %p11 = scmp.ge.s32.totalorder %s10, 4
    %s20 = sphi 0, %s22
    %s23 = sphi 0, %s20
    %s24 = sphi 0, %s23
    %s40 = sphi 0, %s24
    %s44 = sphi 0, %s44
    %s46 = sphi 0, %s44
    %s47 = sphi 0, %s46
    %s61 = sphi 0, %s47
    %s65 = sphi 0, %s65
    %s67 = sphi 0, %s65
    %s68 = sphi 0, %s67
    %s82 = sphi 0, %s68
    %s88 = sphi 0, %s90
    %s91 = sphi 0, %s88
    %s92 = sphi 0, %s91
    %s108 = sphi 0, %s92
    %s114 = sphi 0, %s116
    %s117 = sphi 0, %s114
    %s118 = sphi 0, %s117
    %s134 = sphi 0, %s118
  $region4: #{conv_gru_cell.1} parent=0 // loop_header_branch
    %13 = sbr.rel (%p11) target = $region8
  $region5: #{conv_gru_cell.1} parent=0 // loop_body
    %s15 = ssub.s32 %s10, 1
    %s16 = ssub.s32 %s10, 2
    %s17 = sadd.s32 %s10, 1
    %s18 = ssub.s32 %s10, %s17
    %p19 = scmp.eq.s32.totalorder %s18, 0
    %s21 = sadd.s32 %s20, 1
    %s22 = scalar_select %p19, %s20, %s21
    %p25 = pneg %p19
    %p26 = scmp.eq.s32.totalorder %s10, 1
    %p27 = por %p25, %p26
    %p28 = scmp.ne.s32.totalorder %s20, %s23
    %p29 = scmp.eq.s32.totalorder %s10, 0
    %p30 = por %p28, %p29
    %p31 = scmp.ne.s32.totalorder %s20, %s23
    %p32 = scmp.eq.s32.totalorder %s15, 1
    %p33 = por %p31, %p32
    %p34 = scmp.ne.s32.totalorder %s23, %s24
    %p35 = scmp.eq.s32.totalorder %s15, 0
    %p36 = por %p34, %p35
    %p37 = scmp.ne.s32.totalorder %s23, %s24
    %p38 = scmp.eq.s32.totalorder %s16, 1
    %p39 = por %p37, %p38
    %p41 = scmp.ne.s32.totalorder %s24, %s40
    %p42 = scmp.eq.s32.totalorder %s16, 0
    %p43 = por %p41, %p42
    %s45 = sadd.s32 %s44, 1
    %p48 = scmp.eq.s32.totalorder %s10, 1
    %p49 = scmp.ne.s32.totalorder %s44, %s46
    %p50 = scmp.eq.s32.totalorder %s10, 0
    %p51 = por %p49, %p50
    %p52 = scmp.ne.s32.totalorder %s44, %s46
    %p53 = scmp.eq.s32.totalorder %s15, 1
    %p54 = por %p52, %p53
    %p55 = scmp.ne.s32.totalorder %s46, %s47
    %p56 = scmp.eq.s32.totalorder %s15, 0
    %p57 = por %p55, %p56
    %p58 = scmp.ne.s32.totalorder %s46, %s47
    %p59 = scmp.eq.s32.totalorder %s16, 1
    %p60 = por %p58, %p59
    %p62 = scmp.ne.s32.totalorder %s47, %s61
    %p63 = scmp.eq.s32.totalorder %s16, 0
    %p64 = por %p62, %p63
    %s66 = sadd.s32 %s65, 1
    %p69 = scmp.eq.s32.totalorder %s10, 1
    %p70 = scmp.ne.s32.totalorder %s65, %s67
    %p71 = scmp.eq.s32.totalorder %s10, 0
    %p72 = por %p70, %p71
    %p73 = scmp.ne.s32.totalorder %s65, %s67
    %p74 = scmp.eq.s32.totalorder %s15, 1
    %p75 = por %p73, %p74
    %p76 = scmp.ne.s32.totalorder %s67, %s68
    %p77 = scmp.eq.s32.totalorder %s15, 0
    %p78 = por %p76, %p77
    %p79 = scmp.ne.s32.totalorder %s67, %s68
    %p80 = scmp.eq.s32.totalorder %s16, 1
    %p81 = por %p79, %p80
    %p83 = scmp.ne.s32.totalorder %s68, %s82
    %p84 = scmp.eq.s32.totalorder %s16, 0
    %p85 = por %p83, %p84
    %s86 = ssub.s32 %s10, %s17
    %p87 = scmp.eq.s32.totalorder %s86, 0
    %s89 = sadd.s32 %s88, 1
    %s90 = scalar_select %p87, %s88, %s89
    %p93 = pneg %p87
    %p94 = scmp.eq.s32.totalorder %s10, 1
    %p95 = por %p93, %p94
    %p96 = scmp.ne.s32.totalorder %s88, %s91
    %p97 = scmp.eq.s32.totalorder %s10, 0
    %p98 = por %p96, %p97
    %p99 = scmp.ne.s32.totalorder %s88, %s91
    %p100 = scmp.eq.s32.totalorder %s15, 1
    %p101 = por %p99, %p100
    %p102 = scmp.ne.s32.totalorder %s91, %s92
    %p103 = scmp.eq.s32.totalorder %s15, 0
    %p104 = por %p102, %p103
    %p105 = scmp.ne.s32.totalorder %s91, %s92
    %p106 = scmp.eq.s32.totalorder %s16, 1
    %p107 = por %p105, %p106
    %p109 = scmp.ne.s32.totalorder %s92, %s108
    %p110 = scmp.eq.s32.totalorder %s16, 0
    %p111 = por %p109, %p110
    %s112 = ssub.s32 %s10, %s17
    %p113 = scmp.eq.s32.totalorder %s112, 0
    %s115 = sadd.s32 %s114, 1
    %s116 = scalar_select %p113, %s114, %s115
    %p119 = pneg %p113
    %p120 = scmp.eq.s32.totalorder %s10, 1
    %p121 = por %p119, %p120
    %p122 = scmp.ne.s32.totalorder %s114, %s117
    %p123 = scmp.eq.s32.totalorder %s10, 0
    %p124 = por %p122, %p123
    %p125 = scmp.ne.s32.totalorder %s114, %s117
    %p126 = scmp.eq.s32.totalorder %s15, 1
    %p127 = por %p125, %p126
    %p128 = scmp.ne.s32.totalorder %s117, %s118
    %p129 = scmp.eq.s32.totalorder %s15, 0
    %p130 = por %p128, %p129
    %p131 = scmp.ne.s32.totalorder %s117, %s118
    %p132 = scmp.eq.s32.totalorder %s16, 1
    %p133 = por %p131, %p132
    %p135 = scmp.ne.s32.totalorder %s118, %s134
    %p136 = scmp.eq.s32.totalorder %s16, 0
    %p137 = por %p135, %p136
    %p138 = scmp.le.s32.totalorder 1, %s10
    %p139 = scmp.lt.s32.totalorder %s10, 3
    %p140 = pnand %p138, %p139
    %p141 = pneg %p140
    // Predicated region
    $region9: #{conv_gru_cell.1} parent=5 // pred_check
      _
    $region10: #{conv_gru_cell.1} parent=5 // pred_check_branch
      %143 = sbr.rel (%p140) target = $region12
    $region11: #{conv_gru_cell.1} parent=5 // pred_region
      %s144 = ssub.s32 %s10, 1
      // Predicated region
      $region13: #{conv_gru_cell.1} parent=11 // pred_check
        %p145 = pneg %p57
      $region14: #{conv_gru_cell.1} parent=11 // pred_check_branch
        %147 = sbr.rel (%p145) target = $region16
      $region15: #{conv_gru_cell.1} parent=11 // pred_region
        _
      $region16: #{conv_gru_cell.1} parent=11 // pred_fallthru
        _
      // Predicated region
      $region17: #{conv_gru_cell.1} parent=11 // pred_check
        %p148 = pneg %p78
      $region18: #{conv_gru_cell.1} parent=11 // pred_check_branch
        %150 = sbr.rel (%p148) target = $region20
      $region19: #{conv_gru_cell.1} parent=11 // pred_region
        _
      $region20: #{conv_gru_cell.1} parent=11 // pred_fallthru
        _
    $region12: #{conv_gru_cell.1} parent=5 // pred_fallthru
      _
    %p151 = scmp.lt.s32.totalorder %s10, 2
    // Predicated region
    $region21: #{conv_gru_cell.1} parent=5 // pred_check
      %p152 = pneg %p151
    $region22: #{conv_gru_cell.1} parent=5 // pred_check_branch
      %154 = sbr.rel (%p152) target = $region24
    $region23: #{conv_gru_cell.1} parent=5 // pred_region
      // Predicated region
      $region25: #{conv_gru_cell.1} parent=23 // pred_check
        %p155 = pneg %p30
      $region26: #{conv_gru_cell.1} parent=23 // pred_check_branch
        %157 = sbr.rel (%p155) target = $region28
      $region27: #{conv_gru_cell.1} parent=23 // pred_region
        %p158 = scmp.lt.s32.totalorder %s10, 1
        %s159 = scalar_select %p158, %s10, 1
        %s160 = smul.addr %s159, 6
        %s161 = smul.addr %s160, 4
        %s162 = scalar_lea.vmem %s0, %s161
      $region28: #{conv_gru_cell.1} parent=23 // pred_fallthru
        _
      // Predicated region
      $region29: #{conv_gru_cell.1} parent=23 // pred_check
        %p163 = pneg %p98
      $region30: #{conv_gru_cell.1} parent=23 // pred_check_branch
        %165 = sbr.rel (%p163) target = $region32
      $region31: #{conv_gru_cell.1} parent=23 // pred_region
        %p166 = scmp.lt.s32.totalorder %s10, 1
        %s167 = scalar_select %p166, %s10, 1
        %s168 = smul.addr %s167, 2
        %s169 = smul.addr %s168, 8
        %s170 = scalar_lea.vmem %s3, %s169
      $region32: #{conv_gru_cell.1} parent=23 // pred_fallthru
        _
    $region24: #{conv_gru_cell.1} parent=5 // pred_fallthru
      _
    %p171 = scmp.le.s32.totalorder 1, %s10
    %p172 = scmp.lt.s32.totalorder %s10, 3
    %p173 = pnand %p171, %p172
    %p174 = pneg %p173
    // Predicated region
    $region33: #{conv_gru_cell.1} parent=5 // pred_check
      _
    $region34: #{conv_gru_cell.1} parent=5 // pred_check_branch
      %176 = sbr.rel (%p173) target = $region36
    $region35: #{conv_gru_cell.1} parent=5 // pred_region
      %s177 = ssub.s32 %s10, 1
      %p178 = scmp.lt.s32.totalorder %s15, 1
      %s179 = scalar_select %p178, %s15, 1
      %s180 = smul.addr %s179, 6
      %s181 = smul.addr %s180, 4
      %s182 = scalar_lea.vmem %s0, %s181
      %p183 = pneg %p36
      %p184 = pneg %p33
      %p185 = pneg %p57
      %p186 = pneg %p54
      %p187 = pneg %p78
      %p188 = pneg %p75
      %p189 = scmp.lt.s32.totalorder %s15, 1
      %s190 = scalar_select %p189, %s15, 1
      %s191 = smul.addr %s190, 2
      %s192 = smul.addr %s191, 8
      %s193 = scalar_lea.vmem %s3, %s192
      %p194 = pneg %p104
      %p195 = pneg %p101
      %p196 = pneg %p130
      %p197 = pneg %p127
      %p198 = scmp.lt.s32.totalorder %s15, 1
      %s199 = scalar_select %p198, %s15, 1
      %s200 = smul.addr %s199, 2
      %s201 = smul.addr %s200, 8
      %s202 = scalar_lea.vmem %s4, %s201
      %p203 = scmp.lt.s32.totalorder %s15, 1
      %s204 = scalar_select %p203, %s15, 1
      %s205 = smul.addr %s204, 6
      %s206 = smul.addr %s205, 4
      %s207 = scalar_lea.vmem %s0, %s206
      %p208 = scmp.lt.s32.totalorder %s15, 1
      %s209 = scalar_select %p208, %s15, 1
      %s210 = smul.addr %s209, 2
      %s211 = smul.addr %s210, 8
      %s212 = scalar_lea.vmem %s3, %s211
      %p213 = scmp.lt.s32.totalorder %s15, 1
      %s214 = scalar_select %p213, %s15, 1
      %s215 = smul.addr %s214, 2
      %s216 = smul.addr %s215, 8
      %s217 = scalar_lea.vmem %s4, %s216
      %v219 = vld [vmem:[%s1] sm:$0xf]
      %v220 = vld [vmem:[%s1 + $0x4] sm:$0xf]
      %v221 = vld [vmem:[%s1 + $0x8] sm:$0xf]
      %v222 = vld [vmem:[%s1 + $0xc] sm:$0xf]
      %v223 = vld [vmem:[%s207] sm:$0xff]
      %v224 = vld [vmem:[%s207 + $0xc] sm:$0xff]
      %s225 = scalar_lea.vmem %s1, 16
      %v226 = vld [vmem:[%s225] sm:$0xf]
      %v227 = vld [vmem:[%s225 + $0x4] sm:$0xf]
      %v228 = vld [vmem:[%s225 + $0x8] sm:$0xf]
      %v229 = vld [vmem:[%s225 + $0xc] sm:$0xf]
      %v230 = vld [vmem:[%s207] sm:$0xff]
      %v231 = vld [vmem:[%s207 + $0x8] sm:$0xf]
      %v232 = vld [vmem:[%s207 + $0xc] sm:$0xff]
      %v233 = vld [vmem:[%s207 + $0x14] sm:$0xf]
      %v238 = vunpack.c.l.b16 %v226
      %v239 = vunpack.c.l.b16 %v227
      %v240 = vunpack.c.l.b16 %v228
      %v241 = vunpack.c.l.b16 %v229
      %v242 = vpack.c.b16 %v239, %v238
      %v243 = vpack.c.b16 %v241, %v240
      %v248 = vunpack.c.l.b16 %v230
      %v249 = vunpack.c.h.b16 %v230
      %v250 = vunpack.c.l.b16 %v231
      %v251 = vunpack.c.l.b16 %v232
      %v252 = vunpack.c.h.b16 %v232
      %v253 = vunpack.c.l.b16 %v233
      %v254 = vpack.c.b16 %v251, %v248
      %v255 = vpack.c.b16 %v252, %v249
      %v256 = vpack.c.b16 %v253, %v250
      %257 = vrot.lane.b32.xlu0 %v254, 127
      %v258 = vpop.permute.xlu0 %257
      %259 = vrot.lane.b32.xlu0 %v255, 127
      %v260 = vpop.permute.xlu0 %259
      %261 = vrot.lane.b32.xlu0 %v256, 127
      %v262 = vpop.permute.xlu0 %261
      %vm263 = vcmask 1039360
      %v264 = vsel %vm263, %v258, %v260
      %v265 = vsel %vm263, %v260, %v262
      %vm268 = vcmask 130048
      %v270 = vsel %vm268, %v242, 0
      %v273 = vsel %vm268, %v243, 0
      %275 = vmatprep.subr.bf16.mxu0 %v265
      %276 = vmatpush1.bf16.msra.mxu0 %v264
      %277 = vmatprep.subr.bf16.mxu0 0
      %278 = vmatpush1.bf16.msra.mxu0 0
      %279 = vmatprep.subr.bf16.mxu0 0
      %280 = vmatpush1.bf16.msra.mxu0 0
      %281 = vmatprep.subr.bf16.mxu0 0
      %282 = vmatpush1.bf16.msra.mxu0 0
      %283 = vmatprep.subr.bf16.mxu0 0
      %284 = vmatpush1.bf16.msra.mxu0 0
      %285 = vmatprep.subr.bf16.mxu0 0
      %286 = vmatpush1.bf16.msra.mxu0 0
      %287 = vmatprep.subr.bf16.mxu0 0
      %288 = vmatpush1.bf16.msra.mxu0 0
      %289 = vmatprep.subr.bf16.mxu0 0
      %290 = vmatpush1.bf16.msra.mxu0 0
      %291 = vmatprep.subr.bf16.mxu0 0
      %292 = vmatpush1.bf16.msra.mxu0 0
      %293 = vmatprep.subr.bf16.mxu0 0
      %294 = vmatpush1.bf16.msra.mxu0 0
      %295 = vmatprep.subr.bf16.mxu0 0
      %296 = vmatpush1.bf16.msra.mxu0 0
      %297 = vmatprep.subr.bf16.mxu0 0
      %298 = vmatpush1.bf16.msra.mxu0 0
      %299 = vmatprep.subr.bf16.mxu0 0
      %300 = vmatpush1.bf16.msra.mxu0 0
      %301 = vmatprep.subr.bf16.mxu0 0
      %302 = vmatpush1.bf16.msra.mxu0 0
      %303 = vmatprep.subr.bf16.mxu0 0
      %304 = vmatpush1.bf16.msra.mxu0 0
      %305 = vmatprep.subr.bf16.mxu0 0
      %306 = vmatpush1.bf16.msra.mxu0 0
      %307 = vmatprep.mubr.bf16.mxu0 0
      %308 = vmatmul.mubr.bf16.gmra.mrb[0].mxu0 %v270
      %v309 = vpop.f32.mrb[0].mxu0
      %v310 = vadd.f32 0.0, %v309
      %v311 = vpop.f32.mrb[0].mxu0
      %v312 = vadd.f32 0.0, %v311
      %v313 = vpop.f32.mrb[0].mxu0
      %v314 = vadd.f32 0.0, %v313
      %v315 = vpop.f32.mrb[0].mxu0
      %v316 = vadd.f32 0.0, %v315
      %317 = vmatprep.mubr.bf16.mxu0 0
      %318 = vmatmul.mubr.bf16.gmra.mrb[0].mxu0 %v273
      %v319 = vpop.f32.mrb[0].mxu0
      %v320 = vadd.f32 0.0, %v319
      %v321 = vpop.f32.mrb[0].mxu0
      %v322 = vadd.f32 0.0, %v321
      %v323 = vpop.f32.mrb[0].mxu0
      %v324 = vadd.f32 0.0, %v323
      %v325 = vpop.f32.mrb[0].mxu0
      %v326 = vadd.f32 0.0, %v325
      %327 = vdwg.mxu0
      %v332 = vunpack.c.l.b16 %v219
      %v333 = vunpack.c.l.b16 %v220
      %v334 = vunpack.c.l.b16 %v221
      %v335 = vunpack.c.l.b16 %v222
      %v336 = vpack.c.b16 %v333, %v332
      %v337 = vpack.c.b16 %v335, %v334
      %v340 = vunpack.c.l.b16 %v223
      %v341 = vunpack.c.h.b16 %v223
      %v342 = vunpack.c.l.b16 %v224
      %v343 = vunpack.c.h.b16 %v224
      %v344 = vpack.c.b16 %v342, %v340
      %v345 = vpack.c.b16 %v343, %v341
      %v349 = vsel %vm268, %v336, 0
      %v352 = vsel %vm268, %v337, 0
      %354 = vmatprep.subr.bf16.mxu0 %v345
      %355 = vmatpush1.bf16.msra.mxu0 %v344
      %356 = vmatprep.subr.bf16.mxu0 0
      %357 = vmatpush1.bf16.msra.mxu0 0
      %358 = vmatprep.subr.bf16.mxu0 0
      %359 = vmatpush1.bf16.msra.mxu0 0
      %360 = vmatprep.subr.bf16.mxu0 0
      %361 = vmatpush1.bf16.msra.mxu0 0
      %362 = vmatprep.subr.bf16.mxu0 0
      %363 = vmatpush1.bf16.msra.mxu0 0
      %364 = vmatprep.subr.bf16.mxu0 0
      %365 = vmatpush1.bf16.msra.mxu0 0
      %366 = vmatprep.subr.bf16.mxu0 0
      %367 = vmatpush1.bf16.msra.mxu0 0
      %368 = vmatprep.subr.bf16.mxu0 0
      %369 = vmatpush1.bf16.msra.mxu0 0
      %370 = vmatprep.subr.bf16.mxu0 0
      %371 = vmatpush1.bf16.msra.mxu0 0
      %372 = vmatprep.subr.bf16.mxu0 0
      %373 = vmatpush1.bf16.msra.mxu0 0
      %374 = vmatprep.subr.bf16.mxu0 0
      %375 = vmatpush1.bf16.msra.mxu0 0
      %376 = vmatprep.subr.bf16.mxu0 0
      %377 = vmatpush1.bf16.msra.mxu0 0
      %378 = vmatprep.subr.bf16.mxu0 0
      %379 = vmatpush1.bf16.msra.mxu0 0
      %380 = vmatprep.subr.bf16.mxu0 0
      %381 = vmatpush1.bf16.msra.mxu0 0
      %382 = vmatprep.subr.bf16.mxu0 0
      %383 = vmatpush1.bf16.msra.mxu0 0
      %384 = vmatprep.subr.bf16.mxu0 0
      %385 = vmatpush1.bf16.msra.mxu0 0
      %386 = vmatprep.mubr.bf16.mxu0 0
      %387 = vmatmul.mubr.bf16.gmra.mrb[0].mxu0 %v349
      %v388 = vpop.f32.mrb[0].mxu0
      %v389 = vadd.f32 %v310, %v388
      %v390 = vpop.f32.mrb[0].mxu0
      %v391 = vadd.f32 %v312, %v390
      %v392 = vpop.f32.mrb[0].mxu0
      %v393 = vadd.f32 %v314, %v392
      %v394 = vpop.f32.mrb[0].mxu0
      %v395 = vadd.f32 %v316, %v394
      %396 = vmatprep.mubr.bf16.mxu0 0
      %397 = vmatmul.mubr.bf16.gmra.mrb[0].mxu0 %v352
      %v398 = vpop.f32.mrb[0].mxu0
      %v399 = vadd.f32 %v320, %v398
      %v400 = vpop.f32.mrb[0].mxu0
      %v401 = vadd.f32 %v322, %v400
      %v402 = vpop.f32.mrb[0].mxu0
      %v403 = vadd.f32 %v324, %v402
      %v404 = vpop.f32.mrb[0].mxu0
      %v405 = vadd.f32 %v326, %v404
      %406 = vdwg.mxu0
      %s407 = scalar_lea.vmem %s1, 32
      %v408 = vld [vmem:[%s407] sm:$0xf]
      %v409 = vld [vmem:[%s407 + $0x4] sm:$0xf]
      %v410 = vld [vmem:[%s407 + $0x8] sm:$0xf]
      %v411 = vld [vmem:[%s407 + $0xc] sm:$0xf]
      %v416 = vunpack.c.l.b16 %v408
      %v417 = vunpack.c.l.b16 %v409
      %v418 = vunpack.c.l.b16 %v410
      %v419 = vunpack.c.l.b16 %v411
      %v420 = vpack.c.b16 %v417, %v416
      %v421 = vpack.c.b16 %v419, %v418
      %422 = vrot.lane.b32.xlu0 %v254, 126
      %v423 = vpop.permute.xlu0 %422
      %424 = vrot.lane.b32.xlu0 %v255, 126
      %v425 = vpop.permute.xlu0 %424
      %426 = vrot.lane.b32.xlu0 %v256, 126
      %v427 = vpop.permute.xlu0 %426
      %vm428 = vcmask 1031168
      %v429 = vsel %vm428, %v423, %v425
      %v430 = vsel %vm428, %v425, %v427
      %v434 = vsel %vm268, %v420, 0
      %v437 = vsel %vm268, %v421, 0
      %439 = vmatprep.subr.bf16.mxu0 %v430
      %440 = vmatpush1.bf16.msra.mxu0 %v429
      %441 = vmatprep.subr.bf16.mxu0 0
      %442 = vmatpush1.bf16.msra.mxu0 0
      %443 = vmatprep.subr.bf16.mxu0 0
      %444 = vmatpush1.bf16.msra.mxu0 0
      %445 = vmatprep.subr.bf16.mxu0 0
      %446 = vmatpush1.bf16.msra.mxu0 0
      %447 = vmatprep.subr.bf16.mxu0 0
      %448 = vmatpush1.bf16.msra.mxu0 0
      %449 = vmatprep.subr.bf16.mxu0 0
      %450 = vmatpush1.bf16.msra.mxu0 0
      %451 = vmatprep.subr.bf16.mxu0 0
      %452 = vmatpush1.bf16.msra.mxu0 0
      %453 = vmatprep.subr.bf16.mxu0 0
      %454 = vmatpush1.bf16.msra.mxu0 0
      %455 = vmatprep.subr.bf16.mxu0 0
      %456 = vmatpush1.bf16.msra.mxu0 0
      %457 = vmatprep.subr.bf16.mxu0 0
      %458 = vmatpush1.bf16.msra.mxu0 0
      %459 = vmatprep.subr.bf16.mxu0 0
      %460 = vmatpush1.bf16.msra.mxu0 0
      %461 = vmatprep.subr.bf16.mxu0 0
      %462 = vmatpush1.bf16.msra.mxu0 0
      %463 = vmatprep.subr.bf16.mxu0 0
      %464 = vmatpush1.bf16.msra.mxu0 0
      %465 = vmatprep.subr.bf16.mxu0 0
      %466 = vmatpush1.bf16.msra.mxu0 0
      %467 = vmatprep.subr.bf16.mxu0 0
      %468 = vmatpush1.bf16.msra.mxu0 0
      %469 = vmatprep.subr.bf16.mxu0 0
      %470 = vmatpush1.bf16.msra.mxu0 0
      %471 = vmatprep.mubr.bf16.mxu0 0
      %472 = vmatmul.mubr.bf16.gmra.mrb[0].mxu0 %v434
      %v473 = vpop.f32.mrb[0].mxu0
      %v474 = vadd.f32 0.0, %v473
      %v475 = vpop.f32.mrb[0].mxu0
      %v476 = vadd.f32 0.0, %v475
      %v477 = vpop.f32.mrb[0].mxu0
      %v478 = vadd.f32 0.0, %v477
      %v479 = vpop.f32.mrb[0].mxu0
      %v480 = vadd.f32 0.0, %v479
      %481 = vmatprep.mubr.bf16.mxu0 0
      %482 = vmatmul.mubr.bf16.gmra.mrb[0].mxu0 %v437
      %v483 = vpop.f32.mrb[0].mxu0
      %v484 = vadd.f32 0.0, %v483
      %v485 = vpop.f32.mrb[0].mxu0
      %v486 = vadd.f32 0.0, %v485
      %v487 = vpop.f32.mrb[0].mxu0
      %v488 = vadd.f32 0.0, %v487
      %v489 = vpop.f32.mrb[0].mxu0
      %v490 = vadd.f32 0.0, %v489
      %491 = vdwg.mxu0
      %v492 = vadd.f32 %v389, %v474
      %v493 = vadd.f32 %v391, %v476
      %v494 = vadd.f32 %v393, %v478
      %v495 = vadd.f32 %v395, %v480
      %v496 = vadd.f32 %v399, %v484
      %v497 = vadd.f32 %v401, %v486
      %v498 = vadd.f32 %v403, %v488
      %v499 = vadd.f32 %v405, %v490
      %s500 = scalar_lea.vmem %s1, 48
      %v501 = vld [vmem:[%s500] sm:$0xf]
      %v502 = vld [vmem:[%s500 + $0x4] sm:$0xf]
      %v503 = vld [vmem:[%s500 + $0x8] sm:$0xf]
      %v504 = vld [vmem:[%s500 + $0xc] sm:$0xf]
      %v509 = vunpack.c.l.b16 %v501
      %v510 = vunpack.c.l.b16 %v502
      %v511 = vunpack.c.l.b16 %v503
      %v512 = vunpack.c.l.b16 %v504
      %v513 = vpack.c.b16 %v510, %v509
      %v514 = vpack.c.b16 %v512, %v511
      %515 = vrot.lane.b32.xlu0 %v254, 112
      %v516 = vpop.permute.xlu0 %515
      %517 = vrot.lane.b32.xlu0 %v255, 112
      %v518 = vpop.permute.xlu0 %517
      %519 = vrot.lane.b32.xlu0 %v256, 112
      %v520 = vpop.permute.xlu0 %519
      %vm521 = vcmask 916480
      %v522 = vsel %vm521, %v516, %v518
      %v523 = vsel %vm521, %v518, %v520
      %v527 = vsel %vm268, %v513, 0
      %v530 = vsel %vm268, %v514, 0
      %532 = vmatprep.subr.bf16.mxu0 %v523
      %533 = vmatpush1.bf16.msra.mxu0 %v522
      %534 = vmatprep.subr.bf16.mxu0 0
      %535 = vmatpush1.bf16.msra.mxu0 0
      %536 = vmatprep.subr.bf16.mxu0 0
      %537 = vmatpush1.bf16.msra.mxu0 0
      %538 = vmatprep.subr.bf16.mxu0 0
      %539 = vmatpush1.bf16.msra.mxu0 0
      %540 = vmatprep.subr.bf16.mxu0 0
      %541 = vmatpush1.bf16.msra.mxu0 0
      %542 = vmatprep.subr.bf16.mxu0 0
      %543 = vmatpush1.bf16.msra.mxu0 0
      %544 = vmatprep.subr.bf16.mxu0 0
      %545 = vmatpush1.bf16.msra.mxu0 0
      %546 = vmatprep.subr.bf16.mxu0 0
      %547 = vmatpush1.bf16.msra.mxu0 0
      %548 = vmatprep.subr.bf16.mxu0 0
      %549 = vmatpush1.bf16.msra.mxu0 0
      %550 = vmatprep.subr.bf16.mxu0 0
      %551 = vmatpush1.bf16.msra.mxu0 0
      %552 = vmatprep.subr.bf16.mxu0 0
      %553 = vmatpush1.bf16.msra.mxu0 0
      %554 = vmatprep.subr.bf16.mxu0 0
      %555 = vmatpush1.bf16.msra.mxu0 0
      %556 = vmatprep.subr.bf16.mxu0 0
      %557 = vmatpush1.bf16.msra.mxu0 0
      %558 = vmatprep.subr.bf16.mxu0 0
      %559 = vmatpush1.bf16.msra.mxu0 0
      %560 = vmatprep.subr.bf16.mxu0 0
      %561 = vmatpush1.bf16.msra.mxu0 0
      %562 = vmatprep.subr.bf16.mxu0 0
      %563 = vmatpush1.bf16.msra.mxu0 0
      %564 = vmatprep.mubr.bf16.mxu0 0
      %565 = vmatmul.mubr.bf16.gmra.mrb[0].mxu0 %v527
      %v566 = vpop.f32.mrb[0].mxu0
      %v567 = vadd.f32 0.0, %v566
      %v568 = vpop.f32.mrb[0].mxu0
      %v569 = vadd.f32 0.0, %v568
      %v570 = vpop.f32.mrb[0].mxu0
      %v571 = vadd.f32 0.0, %v570
      %v572 = vpop.f32.mrb[0].mxu0
      %v573 = vadd.f32 0.0, %v572
      %574 = vmatprep.mubr.bf16.mxu0 0
      %575 = vmatmul.mubr.bf16.gmra.mrb[0].mxu0 %v530
      %v576 = vpop.f32.mrb[0].mxu0
      %v577 = vadd.f32 0.0, %v576
      %v578 = vpop.f32.mrb[0].mxu0
      %v579 = vadd.f32 0.0, %v578
      %v580 = vpop.f32.mrb[0].mxu0
      %v581 = vadd.f32 0.0, %v580
      %v582 = vpop.f32.mrb[0].mxu0
      %v583 = vadd.f32 0.0, %v582
      %584 = vdwg.mxu0
      %v585 = vadd.f32 %v492, %v567
      %v586 = vadd.f32 %v493, %v569
      %v587 = vadd.f32 %v494, %v571
      %v588 = vadd.f32 %v495, %v573
      %v589 = vadd.f32 %v496, %v577
      %v590 = vadd.f32 %v497, %v579
      %v591 = vadd.f32 %v498, %v581
      %v592 = vadd.f32 %v499, %v583
      %s593 = scalar_lea.vmem %s1, 64
      %v594 = vld [vmem:[%s593] sm:$0xf]
      %v595 = vld [vmem:[%s593 + $0x4] sm:$0xf]
      %v596 = vld [vmem:[%s593 + $0x8] sm:$0xf]
      %v597 = vld [vmem:[%s593 + $0xc] sm:$0xf]
      %v602 = vunpack.c.l.b16 %v594
      %v603 = vunpack.c.l.b16 %v595
      %v604 = vunpack.c.l.b16 %v596
      %v605 = vunpack.c.l.b16 %v597
      %v606 = vpack.c.b16 %v603, %v602
      %v607 = vpack.c.b16 %v605, %v604
      %608 = vrot.lane.b32.xlu0 %v254, 111
      %v609 = vpop.permute.xlu0 %608
      %610 = vrot.lane.b32.xlu0 %v255, 111
      %v611 = vpop.permute.xlu0 %610
      %612 = vrot.lane.b32.xlu0 %v256, 111
      %v613 = vpop.permute.xlu0 %612
      %vm614 = vcmask 908288
      %v615 = vsel %vm614, %v609, %v611
      %v616 = vsel %vm614, %v611, %v613
      %v620 = vsel %vm268, %v606, 0
      %v623 = vsel %vm268, %v607, 0
      %625 = vmatprep.subr.bf16.mxu0 %v616
      %626 = vmatpush1.bf16.msra.mxu0 %v615
      %627 = vmatprep.subr.bf16.mxu0 0
      %628 = vmatpush1.bf16.msra.mxu0 0
      %629 = vmatprep.subr.bf16.mxu0 0
      %630 = vmatpush1.bf16.msra.mxu0 0
      %631 = vmatprep.subr.bf16.mxu0 0
      %632 = vmatpush1.bf16.msra.mxu0 0
      %633 = vmatprep.subr.bf16.mxu0 0
      %634 = vmatpush1.bf16.msra.mxu0 0
      %635 = vmatprep.subr.bf16.mxu0 0
      %636 = vmatpush1.bf16.msra.mxu0 0
      %637 = vmatprep.subr.bf16.mxu0 0
      %638 = vmatpush1.bf16.msra.mxu0 0
      %639 = vmatprep.subr.bf16.mxu0 0
      %640 = vmatpush1.bf16.msra.mxu0 0
      %641 = vmatprep.subr.bf16.mxu0 0
      %642 = vmatpush1.bf16.msra.mxu0 0
      %643 = vmatprep.subr.bf16.mxu0 0
      %644 = vmatpush1.bf16.msra.mxu0 0
      %645 = vmatprep.subr.bf16.mxu0 0
      %646 = vmatpush1.bf16.msra.mxu0 0
      %647 = vmatprep.subr.bf16.mxu0 0
      %648 = vmatpush1.bf16.msra.mxu0 0
      %649 = vmatprep.subr.bf16.mxu0 0
      %650 = vmatpush1.bf16.msra.mxu0 0
      %651 = vmatprep.subr.bf16.mxu0 0
      %652 = vmatpush1.bf16.msra.mxu0 0
      %653 = vmatprep.subr.bf16.mxu0 0
      %654 = vmatpush1.bf16.msra.mxu0 0
      %655 = vmatprep.subr.bf16.mxu0 0
      %656 = vmatpush1.bf16.msra.mxu0 0
      %657 = vmatprep.mubr.bf16.mxu0 0
      %658 = vmatmul.mubr.bf16.gmra.mrb[0].mxu0 %v620
      %v659 = vpop.f32.mrb[0].mxu0
      %v660 = vadd.f32 0.0, %v659
      %v661 = vpop.f32.mrb[0].mxu0
      %v662 = vadd.f32 0.0, %v661
      %v663 = vpop.f32.mrb[0].mxu0
      %v664 = vadd.f32 0.0, %v663
      %v665 = vpop.f32.mrb[0].mxu0
      %v666 = vadd.f32 0.0, %v665
      %667 = vmatprep.mubr.bf16.mxu0 0
      %668 = vmatmul.mubr.bf16.gmra.mrb[0].mxu0 %v623
      %v669 = vpop.f32.mrb[0].mxu0
      %v670 = vadd.f32 0.0, %v669
      %v671 = vpop.f32.mrb[0].mxu0
      %v672 = vadd.f32 0.0, %v671
      %v673 = vpop.f32.mrb[0].mxu0
      %v674 = vadd.f32 0.0, %v673
      %v675 = vpop.f32.mrb[0].mxu0
      %v676 = vadd.f32 0.0, %v675
      %677 = vdwg.mxu0
      %v678 = vadd.f32 %v585, %v660
      %v679 = vadd.f32 %v586, %v662
      %v680 = vadd.f32 %v587, %v664
      %v681 = vadd.f32 %v588, %v666
      %v682 = vadd.f32 %v589, %v670
      %v683 = vadd.f32 %v590, %v672
      %v684 = vadd.f32 %v591, %v674
      %v685 = vadd.f32 %v592, %v676
      %s686 = scalar_lea.vmem %s1, 80
      %v687 = vld [vmem:[%s686] sm:$0xf]
      %v688 = vld [vmem:[%s686 + $0x4] sm:$0xf]
      %v689 = vld [vmem:[%s686 + $0x8] sm:$0xf]
      %v690 = vld [vmem:[%s686 + $0xc] sm:$0xf]
      %v695 = vunpack.c.l.b16 %v687
      %v696 = vunpack.c.l.b16 %v688
      %v697 = vunpack.c.l.b16 %v689
      %v698 = vunpack.c.l.b16 %v690
      %v699 = vpack.c.b16 %v696, %v695
      %v700 = vpack.c.b16 %v698, %v697
      %701 = vrot.lane.b32.xlu0 %v254, 110
      %v702 = vpop.permute.xlu0 %701
      %703 = vrot.lane.b32.xlu0 %v255, 110
      %v704 = vpop.permute.xlu0 %703
      %705 = vrot.lane.b32.xlu0 %v256, 110
      %v706 = vpop.permute.xlu0 %705
      %vm707 = vcmask 900096
      %v708 = vsel %vm707, %v702, %v704
      %v709 = vsel %vm707, %v704, %v706
      %v713 = vsel %vm268, %v699, 0
      %v716 = vsel %vm268, %v700, 0
      %718 = vmatprep.subr.bf16.mxu0 %v709
      %719 = vmatpush1.bf16.msra.mxu0 %v708
      %720 = vmatprep.subr.bf16.mxu0 0
      %721 = vmatpush1.bf16.msra.mxu0 0
      %722 = vmatprep.subr.bf16.mxu0 0
      %723 = vmatpush1.bf16.msra.mxu0 0
      %724 = vmatprep.subr.bf16.mxu0 0
      %725 = vmatpush1.bf16.msra.mxu0 0
      %726 = vmatprep.subr.bf16.mxu0 0
      %727 = vmatpush1.bf16.msra.mxu0 0
      %728 = vmatprep.subr.bf16.mxu0 0
      %729 = vmatpush1.bf16.msra.mxu0 0
      %730 = vmatprep.subr.bf16.mxu0 0
      %731 = vmatpush1.bf16.msra.mxu0 0
      %732 = vmatprep.subr.bf16.mxu0 0
      %733 = vmatpush1.bf16.msra.mxu0 0
      %734 = vmatprep.subr.bf16.mxu0 0
      %735 = vmatpush1.bf16.msra.mxu0 0
      %736 = vmatprep.subr.bf16.mxu0 0
      %737 = vmatpush1.bf16.msra.mxu0 0
      %738 = vmatprep.subr.bf16.mxu0 0
      %739 = vmatpush1.bf16.msra.mxu0 0
      %740 = vmatprep.subr.bf16.mxu0 0
      %741 = vmatpush1.bf16.msra.mxu0 0
      %742 = vmatprep.subr.bf16.mxu0 0
      %743 = vmatpush1.bf16.msra.mxu0 0
      %744 = vmatprep.subr.bf16.mxu0 0
      %745 = vmatpush1.bf16.msra.mxu0 0
      %746 = vmatprep.subr.bf16.mxu0 0
      %747 = vmatpush1.bf16.msra.mxu0 0
      %748 = vmatprep.subr.bf16.mxu0 0
      %749 = vmatpush1.bf16.msra.mxu0 0
      %750 = vmatprep.mubr.bf16.mxu0 0
      %751 = vmatmul.mubr.bf16.gmra.mrb[0].mxu0 %v713
      %v752 = vpop.f32.mrb[0].mxu0
      %v753 = vadd.f32 0.0, %v752
      %v754 = vpop.f32.mrb[0].mxu0
      %v755 = vadd.f32 0.0, %v754
      %v756 = vpop.f32.mrb[0].mxu0
      %v757 = vadd.f32 0.0, %v756
      %v758 = vpop.f32.mrb[0].mxu0
      %v759 = vadd.f32 0.0, %v758
      %760 = vmatprep.mubr.bf16.mxu0 0
      %761 = vmatmul.mubr.bf16.gmra.mrb[0].mxu0 %v716
      %v762 = vpop.f32.mrb[0].mxu0
      %v763 = vadd.f32 0.0, %v762
      %v764 = vpop.f32.mrb[0].mxu0
      %v765 = vadd.f32 0.0, %v764
      %v766 = vpop.f32.mrb[0].mxu0
      %v767 = vadd.f32 0.0, %v766
      %v768 = vpop.f32.mrb[0].mxu0
      %v769 = vadd.f32 0.0, %v768
      %770 = vdwg.mxu0
      %v771 = vadd.f32 %v678, %v753
      %v772 = vadd.f32 %v679, %v755
      %v773 = vadd.f32 %v680, %v757
      %v774 = vadd.f32 %v681, %v759
      %v775 = vadd.f32 %v682, %v763
      %v776 = vadd.f32 %v683, %v765
      %v777 = vadd.f32 %v684, %v767
      %v778 = vadd.f32 %v685, %v769
      %s779 = scalar_lea.vmem %s1, 96
      %v780 = vld [vmem:[%s779] sm:$0xf]
      %v781 = vld [vmem:[%s779 + $0x4] sm:$0xf]
      %v782 = vld [vmem:[%s779 + $0x8] sm:$0xf]
      %v783 = vld [vmem:[%s779 + $0xc] sm:$0xf]
      %v788 = vunpack.c.l.b16 %v780
      %v789 = vunpack.c.l.b16 %v781
      %v790 = vunpack.c.l.b16 %v782
      %v791 = vunpack.c.l.b16 %v783
      %v792 = vpack.c.b16 %v789, %v788
      %v793 = vpack.c.b16 %v791, %v790
      %794 = vrot.lane.b32.xlu0 %v254, 96
      %v795 = vpop.permute.xlu0 %794
      %796 = vrot.lane.b32.xlu0 %v255, 96
      %v797 = vpop.permute.xlu0 %796
      %798 = vrot.lane.b32.xlu0 %v256, 96
      %v799 = vpop.permute.xlu0 %798
      %vm800 = vcmask 785408
      %v801 = vsel %vm800, %v795, %v797
      %v802 = vsel %vm800, %v797, %v799
      %v806 = vsel %vm268, %v792, 0
      %v809 = vsel %vm268, %v793, 0
      %811 = vmatprep.subr.bf16.mxu0 %v802
      %812 = vmatpush1.bf16.msra.mxu0 %v801
      %813 = vmatprep.subr.bf16.mxu0 0
      %814 = vmatpush1.bf16.msra.mxu0 0
      %815 = vmatprep.subr.bf16.mxu0 0
      %816 = vmatpush1.bf16.msra.mxu0 0
      %817 = vmatprep.subr.bf16.mxu0 0
      %818 = vmatpush1.bf16.msra.mxu0 0
      %819 = vmatprep.subr.bf16.mxu0 0
      %820 = vmatpush1.bf16.msra.mxu0 0
      %821 = vmatprep.subr.bf16.mxu0 0
      %822 = vmatpush1.bf16.msra.mxu0 0
      %823 = vmatprep.subr.bf16.mxu0 0
      %824 = vmatpush1.bf16.msra.mxu0 0
      %825 = vmatprep.subr.bf16.mxu0 0
      %826 = vmatpush1.bf16.msra.mxu0 0
      %827 = vmatprep.subr.bf16.mxu0 0
      %828 = vmatpush1.bf16.msra.mxu0 0
      %829 = vmatprep.subr.bf16.mxu0 0
      %830 = vmatpush1.bf16.msra.mxu0 0
      %831 = vmatprep.subr.bf16.mxu0 0
      %832 = vmatpush1.bf16.msra.mxu0 0
      %833 = vmatprep.subr.bf16.mxu0 0
      %834 = vmatpush1.bf16.msra.mxu0 0
      %835 = vmatprep.subr.bf16.mxu0 0
      %836 = vmatpush1.bf16.msra.mxu0 0
      %837 = vmatprep.subr.bf16.mxu0 0
      %838 = vmatpush1.bf16.msra.mxu0 0
      %839 = vmatprep.subr.bf16.mxu0 0
      %840 = vmatpush1.bf16.msra.mxu0 0
      %841 = vmatprep.subr.bf16.mxu0 0
      %842 = vmatpush1.bf16.msra.mxu0 0
      %843 = vmatprep.mubr.bf16.mxu0 0
      %844 = vmatmul.mubr.bf16.gmra.mrb[0].mxu0 %v806
      %v845 = vpop.f32.mrb[0].mxu0
      %v846 = vadd.f32 0.0, %v845
      %v847 = vpop.f32.mrb[0].mxu0
      %v848 = vadd.f32 0.0, %v847
      %v849 = vpop.f32.mrb[0].mxu0
      %v850 = vadd.f32 0.0, %v849
      %v851 = vpop.f32.mrb[0].mxu0
      %v852 = vadd.f32 0.0, %v851
      %853 = vmatprep.mubr.bf16.mxu0 0
      %854 = vmatmul.mubr.bf16.gmra.mrb[0].mxu0 %v809
      %v855 = vpop.f32.mrb[0].mxu0
      %v856 = vadd.f32 0.0, %v855
      %v857 = vpop.f32.mrb[0].mxu0
      %v858 = vadd.f32 0.0, %v857
      %v859 = vpop.f32.mrb[0].mxu0
      %v860 = vadd.f32 0.0, %v859
      %v861 = vpop.f32.mrb[0].mxu0
      %v862 = vadd.f32 0.0, %v861
      %863 = vdwg.mxu0
      %v864 = vadd.f32 %v771, %v846
      %v865 = vadd.f32 %v772, %v848
      %v866 = vadd.f32 %v773, %v850
      %v867 = vadd.f32 %v774, %v852
      %v868 = vadd.f32 %v775, %v856
      %v869 = vadd.f32 %v776, %v858
      %v870 = vadd.f32 %v777, %v860
      %v871 = vadd.f32 %v778, %v862
      %s872 = scalar_lea.vmem %s1, 112
      %v873 = vld [vmem:[%s872] sm:$0xf]
      %v874 = vld [vmem:[%s872 + $0x4] sm:$0xf]
      %v875 = vld [vmem:[%s872 + $0x8] sm:$0xf]
      %v876 = vld [vmem:[%s872 + $0xc] sm:$0xf]
      %v881 = vunpack.c.l.b16 %v873
      %v882 = vunpack.c.l.b16 %v874
      %v883 = vunpack.c.l.b16 %v875
      %v884 = vunpack.c.l.b16 %v876
      %v885 = vpack.c.b16 %v882, %v881
      %v886 = vpack.c.b16 %v884, %v883
      %887 = vrot.lane.b32.xlu0 %v254, 95
      %v888 = vpop.permute.xlu0 %887
      %889 = vrot.lane.b32.xlu0 %v255, 95
      %v890 = vpop.permute.xlu0 %889
      %891 = vrot.lane.b32.xlu0 %v256, 95
      %v892 = vpop.permute.xlu0 %891
      %vm893 = vcmask 777216
      %v894 = vsel %vm893, %v888, %v890
      %v895 = vsel %vm893, %v890, %v892
      %v899 = vsel %vm268, %v885, 0
      %v902 = vsel %vm268, %v886, 0
      %904 = vmatprep.subr.bf16.mxu0 %v895
      %905 = vmatpush1.bf16.msra.mxu0 %v894
      %906 = vmatprep.subr.bf16.mxu0 0
      %907 = vmatpush1.bf16.msra.mxu0 0
      %908 = vmatprep.subr.bf16.mxu0 0
      %909 = vmatpush1.bf16.msra.mxu0 0
      %910 = vmatprep.subr.bf16.mxu0 0
      %911 = vmatpush1.bf16.msra.mxu0 0
      %912 = vmatprep.subr.bf16.mxu0 0
      %913 = vmatpush1.bf16.msra.mxu0 0
      %914 = vmatprep.subr.bf16.mxu0 0
      %915 = vmatpush1.bf16.msra.mxu0 0
      %916 = vmatprep.subr.bf16.mxu0 0
      %917 = vmatpush1.bf16.msra.mxu0 0
      %918 = vmatprep.subr.bf16.mxu0 0
      %919 = vmatpush1.bf16.msra.mxu0 0
      %920 = vmatprep.subr.bf16.mxu0 0
      %921 = vmatpush1.bf16.msra.mxu0 0
      %922 = vmatprep.subr.bf16.mxu0 0
      %923 = vmatpush1.bf16.msra.mxu0 0
      %924 = vmatprep.subr.bf16.mxu0 0
      %925 = vmatpush1.bf16.msra.mxu0 0
      %926 = vmatprep.subr.bf16.mxu0 0
      %927 = vmatpush1.bf16.msra.mxu0 0
      %928 = vmatprep.subr.bf16.mxu0 0
      %929 = vmatpush1.bf16.msra.mxu0 0
      %930 = vmatprep.subr.bf16.mxu0 0
      %931 = vmatpush1.bf16.msra.mxu0 0
      %932 = vmatprep.subr.bf16.mxu0 0
      %933 = vmatpush1.bf16.msra.mxu0 0
      %934 = vmatprep.subr.bf16.mxu0 0
      %935 = vmatpush1.bf16.msra.mxu0 0
      %936 = vmatprep.mubr.bf16.mxu0 0
      %937 = vmatmul.mubr.bf16.gmra.mrb[0].mxu0 %v899
      %v938 = vpop.f32.mrb[0].mxu0
      %v939 = vadd.f32 0.0, %v938
      %v940 = vpop.f32.mrb[0].mxu0
      %v941 = vadd.f32 0.0, %v940
      %v942 = vpop.f32.mrb[0].mxu0
      %v943 = vadd.f32 0.0, %v942
      %v944 = vpop.f32.mrb[0].mxu0
      %v945 = vadd.f32 0.0, %v944
      %946 = vmatprep.mubr.bf16.mxu0 0
      %947 = vmatmul.mubr.bf16.gmra.mrb[0].mxu0 %v902
      %v948 = vpop.f32.mrb[0].mxu0
      %v949 = vadd.f32 0.0, %v948
      %v950 = vpop.f32.mrb[0].mxu0
      %v951 = vadd.f32 0.0, %v950
      %v952 = vpop.f32.mrb[0].mxu0
      %v953 = vadd.f32 0.0, %v952
      %v954 = vpop.f32.mrb[0].mxu0
      %v955 = vadd.f32 0.0, %v954
      %956 = vdwg.mxu0
      %v957 = vadd.f32 %v864, %v939
      %v958 = vadd.f32 %v865, %v941
      %v959 = vadd.f32 %v866, %v943
      %v960 = vadd.f32 %v867, %v945
      %v961 = vadd.f32 %v868, %v949
      %v962 = vadd.f32 %v869, %v951
      %v963 = vadd.f32 %v870, %v953
      %v964 = vadd.f32 %v871, %v955
      %s965 = scalar_lea.vmem %s1, 128
      %v966 = vld [vmem:[%s965] sm:$0xf]
      %v967 = vld [vmem:[%s965 + $0x4] sm:$0xf]
      %v968 = vld [vmem:[%s965 + $0x8] sm:$0xf]
      %v969 = vld [vmem:[%s965 + $0xc] sm:$0xf]
      %v974 = vunpack.c.l.b16 %v966
      %v975 = vunpack.c.l.b16 %v967
      %v976 = vunpack.c.l.b16 %v968
      %v977 = vunpack.c.l.b16 %v969
      %v978 = vpack.c.b16 %v975, %v974
      %v979 = vpack.c.b16 %v977, %v976
      %980 = vrot.lane.b32.xlu0 %v254, 94
      %v981 = vpop.permute.xlu0 %980
      %982 = vrot.lane.b32.xlu0 %v255, 94
      %v983 = vpop.permute.xlu0 %982
      %984 = vrot.lane.b32.xlu0 %v256, 94
      %v985 = vpop.permute.xlu0 %984
      %vm986 = vcmask 769024
      %v987 = vsel %vm986, %v981, %v983
      %v988 = vsel %vm986, %v983, %v985
      %v992 = vsel %vm268, %v978, 0
      %v995 = vsel %vm268, %v979, 0
      %997 = vmatprep.subr.bf16.mxu0 %v988
      %998 = vmatpush1.bf16.msra.mxu0 %v987
      %999 = vmatprep.subr.bf16.mxu0 0
      %1000 = vmatpush1.bf16.msra.mxu0 0
      %1001 = vmatprep.subr.bf16.mxu0 0
      %1002 = vmatpush1.bf16.msra.mxu0 0
      %1003 = vmatprep.subr.bf16.mxu0 0
      %1004 = vmatpush1.bf16.msra.mxu0 0
      %1005 = vmatprep.subr.bf16.mxu0 0
      %1006 = vmatpush1.bf16.msra.mxu0 0
      %1007 = vmatprep.subr.bf16.mxu0 0
      %1008 = vmatpush1.bf16.msra.mxu0 0
      %1009 = vmatprep.subr.bf16.mxu0 0
      %1010 = vmatpush1.bf16.msra.mxu0 0
      %1011 = vmatprep.subr.bf16.mxu0 0
      %1012 = vmatpush1.bf16.msra.mxu0 0
      %1013 = vmatprep.subr.bf16.mxu0 0
      %1014 = vmatpush1.bf16.msra.mxu0 0
      %1015 = vmatprep.subr.bf16.mxu0 0
      %1016 = vmatpush1.bf16.msra.mxu0 0
      %1017 = vmatprep.subr.bf16.mxu0 0
      %1018 = vmatpush1.bf16.msra.mxu0 0
      %1019 = vmatprep.subr.bf16.mxu0 0
      %1020 = vmatpush1.bf16.msra.mxu0 0
      %1021 = vmatprep.subr.bf16.mxu0 0
      %1022 = vmatpush1.bf16.msra.mxu0 0
      %1023 = vmatprep.subr.bf16.mxu0 0
      %1024 = vmatpush1.bf16.msra.mxu0 0
      %1025 = vmatprep.subr.bf16.mxu0 0
      %1026 = vmatpush1.bf16.msra.mxu0 0
      %1027 = vmatprep.subr.bf16.mxu0 0
      %1028 = vmatpush1.bf16.msra.mxu0 0
      %1029 = vmatprep.mubr.bf16.mxu0 0
      %1030 = vmatmul.mubr.bf16.gmra.mrb[0].mxu0 %v992
      %v1031 = vpop.f32.mrb[0].mxu0
      %v1032 = vadd.f32 0.0, %v1031
      %v1033 = vpop.f32.mrb[0].mxu0
      %v1034 = vadd.f32 0.0, %v1033
      %v1035 = vpop.f32.mrb[0].mxu0
      %v1036 = vadd.f32 0.0, %v1035
      %v1037 = vpop.f32.mrb[0].mxu0
      %v1038 = vadd.f32 0.0, %v1037
      %1039 = vmatprep.mubr.bf16.mxu0 0
      %1040 = vmatmul.mubr.bf16.gmra.mrb[0].mxu0 %v995
      %v1041 = vpop.f32.mrb[0].mxu0
      %v1042 = vadd.f32 0.0, %v1041
      %v1043 = vpop.f32.mrb[0].mxu0
      %v1044 = vadd.f32 0.0, %v1043
      %v1045 = vpop.f32.mrb[0].mxu0
      %v1046 = vadd.f32 0.0, %v1045
      %v1047 = vpop.f32.mrb[0].mxu0
      %v1048 = vadd.f32 0.0, %v1047
      %1049 = vdwg.mxu0
      %v1050 = vadd.f32 %v957, %v1032
      %v1051 = vadd.f32 %v958, %v1034
      %v1052 = vadd.f32 %v959, %v1036
      %v1053 = vadd.f32 %v960, %v1038
      %v1054 = vadd.f32 %v961, %v1042
      %v1055 = vadd.f32 %v962, %v1044
      %v1056 = vadd.f32 %v963, %v1046
      %v1057 = vadd.f32 %v964, %v1048
      %v1058 = vld [vmem:[%s2] sm:$0xff]
      %v1059 = vld [vmem:[%s2 + $0x8] sm:$0xff]
      %v1060 = vld [vmem:[%s2 + $0x10] sm:$0xff]
      %v1061 = vld [vmem:[%s2 + $0x18] sm:$0xff]
      %1063 = vset.pattern.permute.xlu0 0
      %1064 = vperm.xlu0 %1063, %v1058
      %v1065 = vpop.permute.xlu0 %1064
      %1068 = vset.pattern.permute.xlu0 0
      %1069 = vperm.xlu0 %1068, %v1059
      %v1070 = vpop.permute.xlu0 %1069
      %1073 = vset.pattern.permute.xlu0 0
      %1074 = vperm.xlu0 %1073, %v1060
      %v1075 = vpop.permute.xlu0 %1074
      %1078 = vset.pattern.permute.xlu0 0
      %1079 = vperm.xlu0 %1078, %v1061
      %v1080 = vpop.permute.xlu0 %1079
      %v1082 = vadd.f32 %v1050, %v1065
      %v1083 = vadd.f32 %v1051, %v1065
      %v1084 = vadd.f32 %v1052, %v1070
      %v1085 = vadd.f32 %v1053, %v1070
      %v1086 = vadd.f32 %v1054, %v1075
      %v1087 = vadd.f32 %v1055, %v1075
      %v1088 = vadd.f32 %v1056, %v1080
      %v1089 = vadd.f32 %v1057, %v1080
      %v1090 = vxor.u32 %v1082, 2147483648
      %v1091 = vxor.u32 %v1083, 2147483648
      %v1092 = vxor.u32 %v1084, 2147483648
      %v1093 = vxor.u32 %v1085, 2147483648
      %v1094 = vmul.f32 %v1090, 1.442695
      %v1095 = vpow.pop %v1094
      %v1096 = vmul.f32 %v1091, 1.442695
      %v1097 = vpow.pop %v1096
      %v1098 = vmul.f32 %v1092, 1.442695
      %v1099 = vpow.pop %v1098
      %v1100 = vmul.f32 %v1093, 1.442695
      %v1101 = vpow.pop %v1100
      %v1102 = vadd.f32 %v1095, 1.0
      %v1103 = vadd.f32 %v1097, 1.0
      %v1104 = vadd.f32 %v1099, 1.0
      %v1105 = vadd.f32 %v1101, 1.0
      %v1106 = vrcp.pop %v1102
      %v1107 = vmul.f32 1.0, %v1106
      %v1108 = vrcp.pop %v1103
      %v1109 = vmul.f32 1.0, %v1108
      %v1110 = vrcp.pop %v1104
      %v1111 = vmul.f32 1.0, %v1110
      %v1112 = vrcp.pop %v1105
      %v1113 = vmul.f32 1.0, %v1112
      %v1114 = vmul.f32 %v1107, %v1088
      %v1115 = vmul.f32 %v1109, %v1089
      %v1116 = vadd.f32 %v1086, %v1114
      %v1117 = vadd.f32 %v1087, %v1115
      %v1118 = vtanh.pop %v1116
      %v1119 = vtanh.pop %v1117
      %v1120 = vld [vmem:[%s212] sm:$0xff]
      %v1121 = vld [vmem:[%s212 + $0x8] sm:$0xff]
      %v1122 = vsub.f32 %v1120, %v1118
      %v1123 = vsub.f32 %v1121, %v1119
      %v1124 = vmul.f32 %v1111, %v1122
      %v1125 = vmul.f32 %v1113, %v1123
      %v1126 = vadd.f32 %v1118, %v1124
      %v1127 = vadd.f32 %v1119, %v1125
      %1128 = vst [vmem:[%s217] sm:$0xff] %v1126
      %1129 = vst [vmem:[%s217 + $0x8] sm:$0xff] %v1127
      %p1130 = scmp.lt.s32.totalorder %s15, 1
      %s1131 = scalar_select %p1130, %s15, 1
      %s1132 = smul.addr %s1131, 2
      %s1133 = smul.addr %s1132, 8
      %s1134 = scalar_lea.vmem %s4, %s1133
      // Predicated region
      $region37: #{conv_gru_cell.1} parent=35 // pred_check
        %p1135 = pneg %p127
      $region38: #{conv_gru_cell.1} parent=35 // pred_check_branch
        %1137 = sbr.rel (%p1135) target = $region40
      $region39: #{conv_gru_cell.1} parent=35 // pred_region
        _
      $region40: #{conv_gru_cell.1} parent=35 // pred_fallthru
        _
    $region36: #{conv_gru_cell.1} parent=5 // pred_fallthru
      _
    %p1138 = scmp.le.s32.totalorder 2, %s10
    // Predicated region
    $region41: #{conv_gru_cell.1} parent=5 // pred_check
      %p1139 = pneg %p1138
    $region42: #{conv_gru_cell.1} parent=5 // pred_check_branch
      %1141 = sbr.rel (%p1139) target = $region44
    $region43: #{conv_gru_cell.1} parent=5 // pred_region
      %s1142 = ssub.s32 %s10, 2
      // Predicated region
      $region45: #{conv_gru_cell.1} parent=43 // pred_check
        %p1143 = pneg %p133
      $region46: #{conv_gru_cell.1} parent=43 // pred_check_branch
        %1145 = sbr.rel (%p1143) target = $region48
      $region47: #{conv_gru_cell.1} parent=43 // pred_region
        %p1146 = scmp.lt.s32.totalorder %s16, 1
        %s1147 = scalar_select %p1146, %s16, 1
        %s1148 = smul.addr %s1147, 2
        %s1149 = smul.addr %s1148, 8
        %s1150 = scalar_lea.vmem %s4, %s1149
      $region48: #{conv_gru_cell.1} parent=43 // pred_fallthru
        _
    $region44: #{conv_gru_cell.1} parent=5 // pred_fallthru
      _
  $region6: #{conv_gru_cell.1} parent=0 // loop_footer
    %s14 = sadd.s32 1, %s10
  $region7: #{conv_gru_cell.1} parent=0 // loop_footer_branch
    %9 = sbr.rel target = $region3
  $region8: #{conv_gru_cell.1} parent=0 // loop_exit
    _

</llo_original>
